<compile_context>
chip_gen: v7x
topology: tpu7x:2x2x1
jax: 0.10.0
libtpu: 0.0.40
codegen_flags: <defaults>
</compile_context>

<pallas_src>
from functools import partial

import jax
import jax.numpy as jnp
from jax import lax
from jax.experimental import pallas as pl
from jax.experimental.pallas import tpu as pltpu

# Small, self-consistent hyper-parameters
INPUT_DIM = 17
AUGMENT_DIM = 0
HIDDEN_DIM = 32
NUM_LAYERS = 2                      # >= 2 (input layer + (N-1) hidden + output)
FEAT = INPUT_DIM - 1                # feature width of y and v (16)
IN0 = 1 + 2 * FEAT                  # actual width of cat([t, y, v], 1) = 33
OUT_DIM = INPUT_DIM + AUGMENT_DIM   # final Linear out_features
HALF_BATCH = 64                     # B; z has 2*B = 128 rows (fills MXU rows)

# ---- packed parameter slab layout (single VMEM input, static row offsets) ----
# columns: 2*HIDDEN_DIM
ROW_W0 = 0                                        # [W0y | W0v] : rows [0,F), all cols
ROW_WH = FEAT                                     # hidden W_i^T: rows [F+i*H, F+(i+1)*H), cols [0,H)
ROW_WF = FEAT + (NUM_LAYERS - 1) * HIDDEN_DIM     # final W^T (pre-sliced): H rows, cols [0,F)
ROW_TB = FEAT + NUM_LAYERS * HIDDEN_DIM           # [ w0_trow | b0 ] : 1 row
ROW_BH = ROW_TB + 1                               # hidden biases    : 1 row each, cols [0,H)
ROW_BF = ROW_BH + (NUM_LAYERS - 1)                # final bias (pre-sliced): 1 row, cols [0,F)
SLAB_ROWS = ((ROW_BF + 1 + 7) // 8) * 8           # pad rows to sublane multiple
SLAB_COLS = 2 * HIDDEN_DIM


def prepare_params(torch_params):
    """One-time conversion from torch-layout (out,in) weights to a single packed
    VMEM slab.  Hoists all transposes / splits / the output-column slice and
    collapses 9 tiny inputs (9 prologue DMAs) into one."""
    W0, b0, Whs, bhs, Wf, bf = torch_params
    F, H = FEAT, HIDDEN_DIM
    W0t = W0.T                                           # (IN0, H)
    w0_trow = W0t[0, :]                                  # (H,) coefficient of t
    W0_wide = jnp.concatenate([W0t[1:1 + F, :],          # W0y
                               W0t[1 + F:1 + 2 * F, :]],  # W0v
                              axis=1)                    # (F, 2H)

    slab = jnp.zeros((SLAB_ROWS, SLAB_COLS), jnp.float32)
    slab = slab.at[ROW_W0:ROW_W0 + F, :].set(W0_wide)
    for i, Wh in enumerate(Whs):
        slab = slab.at[ROW_WH + i * H:ROW_WH + (i + 1) * H, 0:H].set(Wh.T)
    slab = slab.at[ROW_WF:ROW_WF + H, 0:F].set(Wf[:F, :].T)   # pre-sliced final W
    slab = slab.at[ROW_TB, 0:H].set(w0_trow)
    slab = slab.at[ROW_TB, H:2 * H].set(b0)
    for i, bh in enumerate(bhs):
        slab = slab.at[ROW_BH + i, 0:H].set(bh)
    slab = slab.at[ROW_BF, 0:F].set(bf[:F])                   # pre-sliced final b
    return slab


def _mlp_rhs(z, t, p_ref):
    """dz/dt for the second-order augmented ODE (the module's forward).
    z: (2B, F) value;  t: f32 scalar or (1,1) array;  p_ref: packed slab ref."""
    F, H = FEAT, HIDDEN_DIM
    B = z.shape[0] // 2

    # Layer 0 (merged): cat([t,y,v]) @ W0^T + b0  ==  (z @ [W0y|W0v]) combined
    #   r[:B,:H] = y@W0y,  r[B:,H:] = v@W0v  ;  t contribution folded in.
    r = jnp.dot(z, p_ref[ROW_W0:ROW_W0 + F, :],
                preferred_element_type=jnp.float32)           # (2B, 2H)
    h = jnp.tanh(r[:B, :H] + r[B:, H:]
                 + t * p_ref[ROW_TB:ROW_TB + 1, 0:H]          # t * w0_trow
                 + p_ref[ROW_TB:ROW_TB + 1, H:2 * H])         # b0

    # Hidden layers (static unroll; NUM_LAYERS-1 == 1 here).
    # TODO(synk): for larger NUM_LAYERS switch to lax.fori_loop(..., unroll=True)
    # with pl.ds row slices to keep vreg live ranges bounded.
    for i in range(NUM_LAYERS - 1):
        w = p_ref[ROW_WH + i * H:ROW_WH + (i + 1) * H, 0:H]
        b = p_ref[ROW_BH + i:ROW_BH + i + 1, 0:H]
        h = jnp.tanh(jnp.dot(h, w, preferred_element_type=jnp.float32) + b)

    # Final layer, already restricted to the first (input_dim - 1) outputs.
    out = (jnp.dot(h, p_ref[ROW_WF:ROW_WF + H, 0:F],
                   preferred_element_type=jnp.float32)
           + p_ref[ROW_BF:ROW_BF + 1, 0:F])

    # cat([v, out[:, :input_dim-1]], dim=0)
    return jnp.concatenate([z[B:, :], out], axis=0)


def _ode_rhs_kernel(t_ref, z_ref, p_ref, o_ref):
    # t_ref: (1,1) SMEM scalar; z_ref/(o_ref): (2B, F) VMEM; p_ref: packed slab.
    o_ref[...] = _mlp_rhs(z_ref[...], t_ref[0, 0], p_ref).astype(o_ref.dtype)


def _ode_rk4_kernel(ts_ref, z0_ref, p_ref, zT_ref, *, n_steps):
    # Fused classic RK4 integrator: n_steps * 4 RHS evaluations in ONE call.
    # ts_ref: (1,2) SMEM = [t0, dt]; z0_ref/zT_ref: (2B, F) VMEM; p_ref: slab.
    dt = ts_ref[0, 1]

    def rhs(z, t):
        return _mlp_rhs(z, t, p_ref)

    def step(_, carry):
        t, z = carry                               # t: (1,1) f32
        k1 = rhs(z, t)
        k2 = rhs(z + (0.5 * dt) * k1, t + 0.5 * dt)
        k3 = rhs(z + (0.5 * dt) * k2, t + 0.5 * dt)
        k4 = rhs(z + dt * k3, t + dt)
        z_new = z + (dt / 6.0) * (k1 + 2.0 * k2 + 2.0 * k3 + k4)
        return (t + dt, z_new)

    t0 = jnp.full((1, 1), ts_ref[0, 0], dtype=jnp.float32)
    _, zT = lax.fori_loop(0, n_steps, step, (t0, z0_ref[...]))
    zT_ref[...] = zT.astype(zT_ref.dtype)


_VMEM = pl.BlockSpec(memory_space=pltpu.MemorySpace.VMEM)
_SMEM = pl.BlockSpec(memory_space=pltpu.MemorySpace.SMEM)


@jax.jit
def second_order_ode_func(t, z, param_slab):
    """Single RHS evaluation == the module's forward(t, z); one pallas_call."""
    two_b, feat = z.shape
    t_arr = jnp.asarray(t, dtype=jnp.float32).reshape(1, 1)
    return pl.pallas_call(
        _ode_rhs_kernel,
        out_shape=jax.ShapeDtypeStruct((two_b, feat), z.dtype),
        in_specs=[_SMEM, _VMEM, _VMEM],
        out_specs=_VMEM,
    )(t_arr, z, param_slab)


@partial(jax.jit, static_argnames=("n_steps",))
def integrate_rk4(z0, t0, dt, param_slab, n_steps):
    """Fused trajectory: RK4 over n_steps time steps inside ONE pallas_call
    (weights DMA'd to VMEM once, per-call dispatch amortized over the run)."""
    two_b, feat = z0.shape
    ts = jnp.stack([jnp.asarray(t0, jnp.float32),
                    jnp.asarray(dt, jnp.float32)]).reshape(1, 2)
    return pl.pallas_call(
        partial(_ode_rk4_kernel, n_steps=n_steps),
        out_shape=jax.ShapeDtypeStruct((two_b, feat), z0.dtype),
        in_specs=[_SMEM, _VMEM, _VMEM],
        out_specs=_VMEM,
    )(ts, z0, param_slab)


if __name__ == "__main__":
    assert NUM_LAYERS >= 2
    key = jax.random.PRNGKey(0)
    ks = jax.random.split(key, 8)

    def linear_init(kw, kb, out_f, in_f):
        # nn.Linear default: U(-1/sqrt(in), 1/sqrt(in)), weight stored (out, in)
        bound = 1.0 / (in_f ** 0.5)
        W = jax.random.uniform(kw, (out_f, in_f), jnp.float32, -bound, bound)
        b = jax.random.uniform(kb, (out_f,), jnp.float32, -bound, bound)
        return W, b

    W0, b0 = linear_init(ks[0], ks[1], HIDDEN_DIM, IN0)
    Whs, bhs = [], []
    kk = ks[2]
    for _ in range(NUM_LAYERS - 1):
        kk, kw, kb = jax.random.split(kk, 3)
        Wh, bh_ = linear_init(kw, kb, HIDDEN_DIM, HIDDEN_DIM)
        Whs.append(Wh)
        bhs.append(bh_)
    Wf, bf = linear_init(ks[3], ks[4], OUT_DIM, HIDDEN_DIM)

    torch_params = (W0, b0, Whs, bhs, Wf, bf)
    param_slab = prepare_params(torch_params)     # hoisted: done once at setup

    z = jax.random.normal(ks[5], (2 * HALF_BATCH, FEAT), jnp.float32)
    t = jnp.float32(0.5)

    # ---- pure-JAX reference following the original PyTorch recipe ----------
    def ref_rhs(t_, z_):
        B = z_.shape[0] // 2
        y_, v_ = z_[:B], z_[B:]
        x_ = jnp.concatenate(
            [jnp.ones((B, 1), jnp.float32) * t_, y_, v_], axis=1)
        h_ = jnp.tanh(x_ @ W0.T + b0)
        for Wh_, bh__ in zip(Whs, bhs):
            h_ = jnp.tanh(h_ @ Wh_.T + bh__)
        net_out = h_ @ Wf.T + bf
        return jnp.concatenate([v_, net_out[:, :INPUT_DIM - 1]], axis=0)

    # 1) Single RHS evaluation (the module forward)
    out = second_order_ode_func(t, z, param_slab)
    out = jax.block_until_ready(out)
    ref = ref_rhs(t, z)
    assert out.shape == (2 * HALF_BATCH, FEAT)
    assert jnp.allclose(out, ref, atol=3e-5, rtol=3e-5), float(
        jnp.max(jnp.abs(out - ref)))

    # 2) Fused RK4 trajectory (dispatch amortized: one call for the whole run)
    N_STEPS, DT, T0 = 8, jnp.float32(0.05), jnp.float32(0.0)
    zT = integrate_rk4(z, T0, DT, param_slab, n_steps=N_STEPS)
    zT = jax.block_until_ready(zT)

    def ref_rk4(z0_, t0_, dt_, n_):
        z_, t_ = z0_, t0_
        for _ in range(n_):
            k1 = ref_rhs(t_, z_)
            k2 = ref_rhs(t_ + 0.5 * dt_, z_ + 0.5 * dt_ * k1)
            k3 = ref_rhs(t_ + 0.5 * dt_, z_ + 0.5 * dt_ * k2)
            k4 = ref_rhs(t_ + dt_, z_ + dt_ * k3)
            z_ = z_ + (dt_ / 6.0) * (k1 + 2.0 * k2 + 2.0 * k3 + k4)
            t_ = t_ + dt_
        return z_

    zT_ref = ref_rk4(z, T0, DT, N_STEPS)
    assert zT.shape == (2 * HALF_BATCH, FEAT)
    assert jnp.allclose(zT, zT_ref, atol=2e-4, rtol=2e-4), float(
        jnp.max(jnp.abs(zT - zT_ref)))

    print("KERNEL_OK")
</pallas_src>

<mosaic_0001>
module attributes {stable_mosaic.version = 11 : i64} {
  func.func @_ode_rhs_kernel(%arg0: memref<1x1xf32, #tpu.memory_space<smem>>, %arg1: memref<128x16xf32, #tpu.memory_space<vmem>>, %arg2: memref<88x64xf32, #tpu.memory_space<vmem>>, %arg3: memref<128x16xf32, #tpu.memory_space<vmem>>) attributes {dimension_semantics = [], scalar_prefetch = 0 : i64, scratch_operands = 0 : i64, tpu.core_type = #tpu.core_type<tc>} {
    %c0 = arith.constant 0 : index
    %c0_0 = arith.constant 0 : index
    %0 = vector.load %arg1[%c0, %c0_0] : memref<128x16xf32, #tpu.memory_space<vmem>>, vector<128x16xf32>
    %c0_1 = arith.constant 0 : index
    %c0_2 = arith.constant 0 : index
    %1 = memref.load %arg0[%c0_1, %c0_2] : memref<1x1xf32, #tpu.memory_space<smem>>
    %c0_3 = arith.constant 0 : index
    %c0_4 = arith.constant 0 : index
    %2 = vector.load %arg2[%c0_3, %c0_4] : memref<88x64xf32, #tpu.memory_space<vmem>>, vector<16x64xf32>
    %cst = arith.constant dense<0.000000e+00> : vector<128x64xf32>
    %3 = tpu.matmul %0, %2, %cst {dimension_numbers = #tpu.dot_dimension_numbers<[1], [0], [0], [1], [0, 0, 1, 1], [], []>} : vector<128x16xf32>, vector<16x64xf32>, vector<128x64xf32> -> vector<128x64xf32>
    %4 = vector.extract_strided_slice %3 {offsets = [0, 0], sizes = [64, 32], strides = [1, 1]} : vector<128x64xf32> to vector<64x32xf32>
    %5 = vector.extract_strided_slice %3 {offsets = [64, 32], sizes = [64, 32], strides = [1, 1]} : vector<128x64xf32> to vector<64x32xf32>
    %6 = arith.addf %4, %5 : vector<64x32xf32>
    %c80 = arith.constant 80 : index
    %c0_5 = arith.constant 0 : index
    %7 = vector.load %arg2[%c80, %c0_5] : memref<88x64xf32, #tpu.memory_space<vmem>>, vector<1x32xf32>
    %8 = vector.broadcast %1 : f32 to vector<1x32xf32>
    %9 = arith.mulf %8, %7 : vector<1x32xf32>
    %10 = vector.broadcast %9 : vector<1x32xf32> to vector<64x32xf32>
    %11 = arith.addf %6, %10 : vector<64x32xf32>
    %c80_6 = arith.constant 80 : index
    %c32 = arith.constant 32 : index
    %12 = vector.load %arg2[%c80_6, %c32] : memref<88x64xf32, #tpu.memory_space<vmem>>, vector<1x32xf32>
    %13 = vector.broadcast %12 : vector<1x32xf32> to vector<64x32xf32>
    %14 = arith.addf %11, %13 : vector<64x32xf32>
    %15 = math.tanh %14 : vector<64x32xf32>
    %c16 = arith.constant 16 : index
    %c0_7 = arith.constant 0 : index
    %16 = vector.load %arg2[%c16, %c0_7] : memref<88x64xf32, #tpu.memory_space<vmem>>, vector<32x32xf32>
    %c81 = arith.constant 81 : index
    %c0_8 = arith.constant 0 : index
    %17 = vector.load %arg2[%c81, %c0_8] : memref<88x64xf32, #tpu.memory_space<vmem>>, vector<1x32xf32>
    %cst_9 = arith.constant dense<0.000000e+00> : vector<64x32xf32>
    %18 = tpu.matmul %15, %16, %cst_9 {dimension_numbers = #tpu.dot_dimension_numbers<[1], [0], [0], [1], [0, 0, 1, 1], [], []>} : vector<64x32xf32>, vector<32x32xf32>, vector<64x32xf32> -> vector<64x32xf32>
    %19 = vector.broadcast %17 : vector<1x32xf32> to vector<64x32xf32>
    %20 = arith.addf %18, %19 : vector<64x32xf32>
    %21 = math.tanh %20 : vector<64x32xf32>
    %c48 = arith.constant 48 : index
    %c0_10 = arith.constant 0 : index
    %22 = vector.load %arg2[%c48, %c0_10] : memref<88x64xf32, #tpu.memory_space<vmem>>, vector<32x16xf32>
    %cst_11 = arith.constant dense<0.000000e+00> : vector<64x16xf32>
    %23 = tpu.matmul %21, %22, %cst_11 {dimension_numbers = #tpu.dot_dimension_numbers<[1], [0], [0], [1], [0, 0, 1, 1], [], []>} : vector<64x32xf32>, vector<32x16xf32>, vector<64x16xf32> -> vector<64x16xf32>
    %c82 = arith.constant 82 : index
    %c0_12 = arith.constant 0 : index
    %24 = vector.load %arg2[%c82, %c0_12] : memref<88x64xf32, #tpu.memory_space<vmem>>, vector<1x16xf32>
    %25 = vector.broadcast %24 : vector<1x16xf32> to vector<64x16xf32>
    %26 = arith.addf %23, %25 : vector<64x16xf32>
    %27 = vector.extract_strided_slice %0 {offsets = [64, 0], sizes = [64, 16], strides = [1, 1]} : vector<128x16xf32> to vector<64x16xf32>
    %28 = tpu.concatenate %27, %26 in 0 : vector<64x16xf32>, vector<64x16xf32> -> vector<128x16xf32>
    %c0_13 = arith.constant 0 : index
    %c0_14 = arith.constant 0 : index
    %29 = vector.load %arg3[%c0_13, %c0_14] : memref<128x16xf32, #tpu.memory_space<vmem>>, vector<128x16xf32>
    tpu.vector_store %arg3[%c0_13, %c0_14], %28 {strides = array<i32>} : memref<128x16xf32, #tpu.memory_space<vmem>>, vector<128x16xf32>,
    return
  }
}

</mosaic_0001>

<llo_original>
// kernel: second_order_ode_func.1
$region0: #{second_order_ode_func.1}
  #allocation0 [shape = 'u32[]', space=smem, size = 0x4, offset = 0x4, fixed_abs, tag = 'smem constant byte address 0x4 - core index']
  #allocation1 [shape = 'u32[144,128]{1,0:T(1,128)}', space=vmem, size = 0x12000, scoped, tag = 'internal scratch']
  #allocation2 [shape = 'f32[1,1]{1,0:T(1,128)S(6)}', space=smem, size = 0x200, scoped, tag = 'scoped memory for second_order_ode_func.1']
  %s0 = inlined_call_operand.<no memory space> [shape: f32[1,1], index: 0, kind: input, shape index: {}]
  %s1 = inlined_call_operand.vmem [shape: f32[128,16], index: 1, kind: input, shape index: {}]
  %s2 = inlined_call_operand.vmem [shape: f32[88,64], index: 2, kind: input, shape index: {}]
  %s3 = inlined_call_operand.vmem [shape: f32[128,16], index: 3, kind: output, shape index: {}]
  %s4 = sld [smem:[#allocation0]]
  $region22: #{second_order_ode_func.1} parent=0
    _
  %s6 = ssub.s32 1, %s4
  %s7 = scalar_select 0, %s6, %s4
  %8 = sst [smem:[#allocation2]] %s0
  // Predicated region
  $region2: #{second_order_ode_func.1} parent=0 // pred_check
    _
  $region3: #{second_order_ode_func.1} parent=0 // pred_check_branch
    %10 = sbr.rel (0) target = $region5
  $region4: #{second_order_ode_func.1} parent=0 // pred_region
    _
  $region5: #{second_order_ode_func.1} parent=0 // pred_fallthru
    _
  // Predicated region
  $region6: #{second_order_ode_func.1} parent=0 // pred_check
    _
  $region7: #{second_order_ode_func.1} parent=0 // pred_check_branch
    %12 = sbr.rel (0) target = $region9
  $region8: #{second_order_ode_func.1} parent=0 // pred_region
    _
  $region9: #{second_order_ode_func.1} parent=0 // pred_fallthru
    _
  // Predicated region
  $region10: #{second_order_ode_func.1} parent=0 // pred_check
    _
  $region11: #{second_order_ode_func.1} parent=0 // pred_check_branch
    %14 = sbr.rel (0) target = $region13
  $region12: #{second_order_ode_func.1} parent=0 // pred_region
    _
  $region13: #{second_order_ode_func.1} parent=0 // pred_fallthru
    _
  %v15 = vld [vmem:[%s1] sm:$0xff]
  %v16 = vld [vmem:[%s1 + $0x8] sm:$0xff]
  %v17 = vld [vmem:[%s1 + $0x10] sm:$0xff]
  %v18 = vld [vmem:[%s1 + $0x18] sm:$0xff]
  %v19 = vld [vmem:[%s1 + $0x20] sm:$0xff]
  %v20 = vld [vmem:[%s1 + $0x28] sm:$0xff]
  %v21 = vld [vmem:[%s1 + $0x30] sm:$0xff]
  %v22 = vld [vmem:[%s1 + $0x38] sm:$0xff]
  %v23 = vld [vmem:[%s1 + $0x40] sm:$0xff]
  %v24 = vld [vmem:[%s1 + $0x48] sm:$0xff]
  %v25 = vld [vmem:[%s1 + $0x50] sm:$0xff]
  %v26 = vld [vmem:[%s1 + $0x58] sm:$0xff]
  %v27 = vld [vmem:[%s1 + $0x60] sm:$0xff]
  %v28 = vld [vmem:[%s1 + $0x68] sm:$0xff]
  %v29 = vld [vmem:[%s1 + $0x70] sm:$0xff]
  %v30 = vld [vmem:[%s1 + $0x78] sm:$0xff]
  %s31 = sld [smem:[#allocation2]]
  %v32 = vld [vmem:[%s2] sm:$0xff]
  %v33 = vld [vmem:[%s2 + $0x8] sm:$0xff]
  %vm34 = vcmask 130048
  %v36 = vsel %vm34, %v15, 0
  %v39 = vsel %vm34, %v16, 0
  %v42 = vsel %vm34, %v17, 0
  %v45 = vsel %vm34, %v18, 0
  %v48 = vsel %vm34, %v19, 0
  %v51 = vsel %vm34, %v20, 0
  %v54 = vsel %vm34, %v21, 0
  %v57 = vsel %vm34, %v22, 0
  %v60 = vsel %vm34, %v23, 0
  %v63 = vsel %vm34, %v24, 0
  %v66 = vsel %vm34, %v25, 0
  %v69 = vsel %vm34, %v26, 0
  %v72 = vsel %vm34, %v27, 0
  %v75 = vsel %vm34, %v28, 0
  %v78 = vsel %vm34, %v29, 0
  %v81 = vsel %vm34, %v30, 0
  %83 = vmatprep.subr.mxu0 0.0
  %84 = vmatpush1.msra.mxu0 %v32
  %85 = vmatprep.subr.mxu0 0.0
  %86 = vmatpush1.msra.mxu0 %v33
  %87 = vmatprep.subr.mxu0 0.0
  %88 = vmatpush1.msra.mxu0 0.0
  %89 = vmatprep.subr.mxu0 0.0
  %90 = vmatpush1.msra.mxu0 0.0
  %91 = vmatprep.subr.mxu0 0.0
  %92 = vmatpush1.msra.mxu0 0.0
  %93 = vmatprep.subr.mxu0 0.0
  %94 = vmatpush1.msra.mxu0 0.0
  %95 = vmatprep.subr.mxu0 0.0
  %96 = vmatpush1.msra.mxu0 0.0
  %97 = vmatprep.subr.mxu0 0.0
  %98 = vmatpush1.msra.mxu0 0.0
  %99 = vmatprep.subr.mxu0 0.0
  %100 = vmatpush1.msra.mxu0 0.0
  %101 = vmatprep.subr.mxu0 0.0
  %102 = vmatpush1.msra.mxu0 0.0
  %103 = vmatprep.subr.mxu0 0.0
  %104 = vmatpush1.msra.mxu0 0.0
  %105 = vmatprep.subr.mxu0 0.0
  %106 = vmatpush1.msra.mxu0 0.0
  %107 = vmatprep.subr.mxu0 0.0
  %108 = vmatpush1.msra.mxu0 0.0
  %109 = vmatprep.subr.mxu0 0.0
  %110 = vmatpush1.msra.mxu0 0.0
  %111 = vmatprep.subr.mxu0 0.0
  %112 = vmatpush1.msra.mxu0 0.0
  %113 = vmatprep.subr.mxu0 0.0
  %114 = vmatpush1.msra.mxu0 0.0
  %115 = vmatprep.subr.mxu0 0.0
  %116 = vmatpush1.msra.mxu0 0.0
  %117 = vmatprep.subr.mxu0 0.0
  %118 = vmatpush1.msra.mxu0 0.0
  %119 = vmatprep.subr.mxu0 0.0
  %120 = vmatpush1.msra.mxu0 0.0
  %121 = vmatprep.subr.mxu0 0.0
  %122 = vmatpush1.msra.mxu0 0.0
  %123 = vmatprep.subr.mxu0 0.0
  %124 = vmatpush1.msra.mxu0 0.0
  %125 = vmatprep.subr.mxu0 0.0
  %126 = vmatpush1.msra.mxu0 0.0
  %127 = vmatprep.subr.mxu0 0.0
  %128 = vmatpush1.msra.mxu0 0.0
  %129 = vmatprep.subr.mxu0 0.0
  %130 = vmatpush1.msra.mxu0 0.0
  %131 = vmatprep.subr.mxu0 0.0
  %132 = vmatpush1.msra.mxu0 0.0
  %133 = vmatprep.subr.mxu0 0.0
  %134 = vmatpush1.msra.mxu0 0.0
  %135 = vmatprep.subr.mxu0 0.0
  %136 = vmatpush1.msra.mxu0 0.0
  %137 = vmatprep.subr.mxu0 0.0
  %138 = vmatpush1.msra.mxu0 0.0
  %139 = vmatprep.subr.mxu0 0.0
  %140 = vmatpush1.msra.mxu0 0.0
  %141 = vmatprep.subr.mxu0 0.0
  %142 = vmatpush1.msra.mxu0 0.0
  %143 = vmatprep.subr.mxu0 0.0
  %144 = vmatpush1.msra.mxu0 0.0
  %145 = vmatprep.subr.mxu0 0.0
  %146 = vmatpush1.msra.mxu0 0.0
  %147 = vmatprep.mubr.f32.mxu0 0.0
  %148 = vmatmul.mubr.f32.gmra.mrb[0].mxu0 %v36
  %v149 = vpop.f32.mrb[0].mxu0
  %v150 = vadd.f32 0.0, %v149
  %v151 = vpop.f32.mrb[0].mxu0
  %152 = vmatprep.mubr.f32.mxu0 0.0
  %153 = vmatmul.mubr.f32.gmra.mrb[0].mxu0 %v39
  %v154 = vpop.f32.mrb[0].mxu0
  %v155 = vadd.f32 0.0, %v154
  %v156 = vpop.f32.mrb[0].mxu0
  %157 = vmatprep.mubr.f32.mxu0 0.0
  %158 = vmatmul.mubr.f32.gmra.mrb[0].mxu0 %v42
  %v159 = vpop.f32.mrb[0].mxu0
  %v160 = vadd.f32 0.0, %v159
  %v161 = vpop.f32.mrb[0].mxu0
  %162 = vmatprep.mubr.f32.mxu0 0.0
  %163 = vmatmul.mubr.f32.gmra.mrb[0].mxu0 %v45
  %v164 = vpop.f32.mrb[0].mxu0
  %v165 = vadd.f32 0.0, %v164
  %v166 = vpop.f32.mrb[0].mxu0
  %167 = vmatprep.mubr.f32.mxu0 0.0
  %168 = vmatmul.mubr.f32.gmra.mrb[0].mxu0 %v48
  %v169 = vpop.f32.mrb[0].mxu0
  %v170 = vadd.f32 0.0, %v169
  %v171 = vpop.f32.mrb[0].mxu0
  %172 = vmatprep.mubr.f32.mxu0 0.0
  %173 = vmatmul.mubr.f32.gmra.mrb[0].mxu0 %v51
  %v174 = vpop.f32.mrb[0].mxu0
  %v175 = vadd.f32 0.0, %v174
  %v176 = vpop.f32.mrb[0].mxu0
  %177 = vmatprep.mubr.f32.mxu0 0.0
  %178 = vmatmul.mubr.f32.gmra.mrb[0].mxu0 %v54
  %v179 = vpop.f32.mrb[0].mxu0
  %v180 = vadd.f32 0.0, %v179
  %v181 = vpop.f32.mrb[0].mxu0
  %182 = vmatprep.mubr.f32.mxu0 0.0
  %183 = vmatmul.mubr.f32.gmra.mrb[0].mxu0 %v57
  %v184 = vpop.f32.mrb[0].mxu0
  %v185 = vadd.f32 0.0, %v184
  %v186 = vpop.f32.mrb[0].mxu0
  %187 = vmatprep.mubr.f32.mxu0 0.0
  %188 = vmatmul.mubr.f32.gmra.mrb[0].mxu0 %v60
  %v189 = vpop.f32.mrb[0].mxu0
  %v190 = vadd.f32 0.0, %v189
  %v191 = vpop.f32.mrb[0].mxu0
  %192 = vmatprep.mubr.f32.mxu0 0.0
  %193 = vmatmul.mubr.f32.gmra.mrb[0].mxu0 %v63
  %v194 = vpop.f32.mrb[0].mxu0
  %v195 = vadd.f32 0.0, %v194
  %v196 = vpop.f32.mrb[0].mxu0
  %197 = vmatprep.mubr.f32.mxu0 0.0
  %198 = vmatmul.mubr.f32.gmra.mrb[0].mxu0 %v66
  %v199 = vpop.f32.mrb[0].mxu0
  %v200 = vadd.f32 0.0, %v199
  %v201 = vpop.f32.mrb[0].mxu0
  %202 = vmatprep.mubr.f32.mxu0 0.0
  %203 = vmatmul.mubr.f32.gmra.mrb[0].mxu0 %v69
  %v204 = vpop.f32.mrb[0].mxu0
  %v205 = vadd.f32 0.0, %v204
  %v206 = vpop.f32.mrb[0].mxu0
  %207 = vmatprep.mubr.f32.mxu0 0.0
  %208 = vmatmul.mubr.f32.gmra.mrb[0].mxu0 %v72
  %v209 = vpop.f32.mrb[0].mxu0
  %v210 = vadd.f32 0.0, %v209
  %v211 = vpop.f32.mrb[0].mxu0
  %212 = vmatprep.mubr.f32.mxu0 0.0
  %213 = vmatmul.mubr.f32.gmra.mrb[0].mxu0 %v75
  %v214 = vpop.f32.mrb[0].mxu0
  %v215 = vadd.f32 0.0, %v214
  %v216 = vpop.f32.mrb[0].mxu0
  %217 = vmatprep.mubr.f32.mxu0 0.0
  %218 = vmatmul.mubr.f32.gmra.mrb[0].mxu0 %v78
  %v219 = vpop.f32.mrb[0].mxu0
  %v220 = vadd.f32 0.0, %v219
  %v221 = vpop.f32.mrb[0].mxu0
  %222 = vmatprep.mubr.f32.mxu0 0.0
  %223 = vmatmul.mubr.f32.gmra.mrb[0].mxu0 %v81
  %v224 = vpop.f32.mrb[0].mxu0
  %v225 = vadd.f32 0.0, %v224
  %v226 = vpop.f32.mrb[0].mxu0
  %227 = vdwg.mxu0
  %236 = vrot.lane.b32.xlu0 %v190, 96
  %v237 = vpop.permute.xlu0 %236
  %238 = vrot.lane.b32.xlu0 %v195, 96
  %v239 = vpop.permute.xlu0 %238
  %240 = vrot.lane.b32.xlu0 %v200, 96
  %v241 = vpop.permute.xlu0 %240
  %242 = vrot.lane.b32.xlu0 %v205, 96
  %v243 = vpop.permute.xlu0 %242
  %244 = vrot.lane.b32.xlu0 %v210, 96
  %v245 = vpop.permute.xlu0 %244
  %246 = vrot.lane.b32.xlu0 %v215, 96
  %v247 = vpop.permute.xlu0 %246
  %248 = vrot.lane.b32.xlu0 %v220, 96
  %v249 = vpop.permute.xlu0 %248
  %250 = vrot.lane.b32.xlu0 %v225, 96
  %v251 = vpop.permute.xlu0 %250
  %v260 = vadd.f32 %v150, %v237
  %v261 = vadd.f32 %v155, %v239
  %v262 = vadd.f32 %v160, %v241
  %v263 = vadd.f32 %v165, %v243
  %v264 = vadd.f32 %v170, %v245
  %v265 = vadd.f32 %v175, %v247
  %v266 = vadd.f32 %v180, %v249
  %v267 = vadd.f32 %v185, %v251
  %v268 = vld [vmem:[%s2 + $0x50] sm:$0x1]
  %v269 = vstv %s31
  %v270 = vmul.f32 %v269, %v268
  %v271 = vlaneseq
  %v272 = vshrl.u32 %v271, 7
  %v273 = vsub.s32 0, %v272
  %v274 = vrot.slane %v270, %v273
  %v275 = vadd.f32 %v260, %v274
  %v276 = vadd.f32 %v261, %v274
  %v277 = vadd.f32 %v262, %v274
  %v278 = vadd.f32 %v263, %v274
  %v279 = vadd.f32 %v264, %v274
  %v280 = vadd.f32 %v265, %v274
  %v281 = vadd.f32 %v266, %v274
  %v282 = vadd.f32 %v267, %v274
  %v283 = vlaneseq
  %v284 = vshrl.u32 %v283, 7
  %v285 = vsub.s32 0, %v284
  %v286 = vrot.slane %v268, %v285
  %288 = vrot.lane.b32.xlu0 %v286, 96
  %v289 = vpop.permute.xlu0 %288
  %v291 = vadd.f32 %v275, %v289
  %v292 = vadd.f32 %v276, %v289
  %v293 = vadd.f32 %v277, %v289
  %v294 = vadd.f32 %v278, %v289
  %v295 = vadd.f32 %v279, %v289
  %v296 = vadd.f32 %v280, %v289
  %v297 = vadd.f32 %v281, %v289
  %v298 = vadd.f32 %v282, %v289
  %v299 = vtanh.pop %v291
  %v300 = vtanh.pop %v292
  %v301 = vtanh.pop %v293
  %v302 = vtanh.pop %v294
  %v303 = vtanh.pop %v295
  %v304 = vtanh.pop %v296
  %v305 = vtanh.pop %v297
  %v306 = vtanh.pop %v298
  %v307 = vld [vmem:[%s2 + $0x10] sm:$0xff]
  %v308 = vld [vmem:[%s2 + $0x18] sm:$0xff]
  %v309 = vld [vmem:[%s2 + $0x20] sm:$0xff]
  %v310 = vld [vmem:[%s2 + $0x28] sm:$0xff]
  %v311 = vld [vmem:[%s2 + $0x51] sm:$0x1]
  %v312 = vlaneseq
  %v313 = vshrl.u32 %v312, 7
  %v314 = vsub.s32 0, %v313
  %v315 = vrot.slane %v311, %v314
  %vm316 = vcmask 261120
  %v318 = vsel %vm316, %v299, 0
  %v321 = vsel %vm316, %v300, 0
  %v324 = vsel %vm316, %v301, 0
  %v327 = vsel %vm316, %v302, 0
  %v330 = vsel %vm316, %v303, 0
  %v333 = vsel %vm316, %v304, 0
  %v336 = vsel %vm316, %v305, 0
  %v339 = vsel %vm316, %v306, 0
  %341 = vmatprep.subr.mxu0 0.0
  %342 = vmatpush1.msra.mxu0 %v307
  %343 = vmatprep.subr.mxu0 0.0
  %344 = vmatpush1.msra.mxu0 %v308
  %345 = vmatprep.subr.mxu0 0.0
  %346 = vmatpush1.msra.mxu0 %v309
  %347 = vmatprep.subr.mxu0 0.0
  %348 = vmatpush1.msra.mxu0 %v310
  %349 = vmatprep.subr.mxu0 0.0
  %350 = vmatpush1.msra.mxu0 0.0
  %351 = vmatprep.subr.mxu0 0.0
  %352 = vmatpush1.msra.mxu0 0.0
  %353 = vmatprep.subr.mxu0 0.0
  %354 = vmatpush1.msra.mxu0 0.0
  %355 = vmatprep.subr.mxu0 0.0
  %356 = vmatpush1.msra.mxu0 0.0
  %357 = vmatprep.subr.mxu0 0.0
  %358 = vmatpush1.msra.mxu0 0.0
  %359 = vmatprep.subr.mxu0 0.0
  %360 = vmatpush1.msra.mxu0 0.0
  %361 = vmatprep.subr.mxu0 0.0
  %362 = vmatpush1.msra.mxu0 0.0
  %363 = vmatprep.subr.mxu0 0.0
  %364 = vmatpush1.msra.mxu0 0.0
  %365 = vmatprep.subr.mxu0 0.0
  %366 = vmatpush1.msra.mxu0 0.0
  %367 = vmatprep.subr.mxu0 0.0
  %368 = vmatpush1.msra.mxu0 0.0
  %369 = vmatprep.subr.mxu0 0.0
  %370 = vmatpush1.msra.mxu0 0.0
  %371 = vmatprep.subr.mxu0 0.0
  %372 = vmatpush1.msra.mxu0 0.0
  %373 = vmatprep.subr.mxu0 0.0
  %374 = vmatpush1.msra.mxu0 0.0
  %375 = vmatprep.subr.mxu0 0.0
  %376 = vmatpush1.msra.mxu0 0.0
  %377 = vmatprep.subr.mxu0 0.0
  %378 = vmatpush1.msra.mxu0 0.0
  %379 = vmatprep.subr.mxu0 0.0
  %380 = vmatpush1.msra.mxu0 0.0
  %381 = vmatprep.subr.mxu0 0.0
  %382 = vmatpush1.msra.mxu0 0.0
  %383 = vmatprep.subr.mxu0 0.0
  %384 = vmatpush1.msra.mxu0 0.0
  %385 = vmatprep.subr.mxu0 0.0
  %386 = vmatpush1.msra.mxu0 0.0
  %387 = vmatprep.subr.mxu0 0.0
  %388 = vmatpush1.msra.mxu0 0.0
  %389 = vmatprep.subr.mxu0 0.0
  %390 = vmatpush1.msra.mxu0 0.0
  %391 = vmatprep.subr.mxu0 0.0
  %392 = vmatpush1.msra.mxu0 0.0
  %393 = vmatprep.subr.mxu0 0.0
  %394 = vmatpush1.msra.mxu0 0.0
  %395 = vmatprep.subr.mxu0 0.0
  %396 = vmatpush1.msra.mxu0 0.0
  %397 = vmatprep.subr.mxu0 0.0
  %398 = vmatpush1.msra.mxu0 0.0
  %399 = vmatprep.subr.mxu0 0.0
  %400 = vmatpush1.msra.mxu0 0.0
  %401 = vmatprep.subr.mxu0 0.0
  %402 = vmatpush1.msra.mxu0 0.0
  %403 = vmatprep.subr.mxu0 0.0
  %404 = vmatpush1.msra.mxu0 0.0
  %405 = vmatprep.mubr.f32.mxu0 0.0
  %406 = vmatmul.mubr.f32.gmra.mrb[0].mxu0 %v318
  %v407 = vpop.f32.mrb[0].mxu0
  %v408 = vadd.f32 %v315, %v407
  %v409 = vpop.f32.mrb[0].mxu0
  %410 = vmatprep.mubr.f32.mxu0 0.0
  %411 = vmatmul.mubr.f32.gmra.mrb[0].mxu0 %v321
  %v412 = vpop.f32.mrb[0].mxu0
  %v413 = vadd.f32 %v315, %v412
  %v414 = vpop.f32.mrb[0].mxu0
  %415 = vmatprep.mubr.f32.mxu0 0.0
  %416 = vmatmul.mubr.f32.gmra.mrb[0].mxu0 %v324
  %v417 = vpop.f32.mrb[0].mxu0
  %v418 = vadd.f32 %v315, %v417
  %v419 = vpop.f32.mrb[0].mxu0
  %420 = vmatprep.mubr.f32.mxu0 0.0
  %421 = vmatmul.mubr.f32.gmra.mrb[0].mxu0 %v327
  %v422 = vpop.f32.mrb[0].mxu0
  %v423 = vadd.f32 %v315, %v422
  %v424 = vpop.f32.mrb[0].mxu0
  %425 = vmatprep.mubr.f32.mxu0 0.0
  %426 = vmatmul.mubr.f32.gmra.mrb[0].mxu0 %v330
  %v427 = vpop.f32.mrb[0].mxu0
  %v428 = vadd.f32 %v315, %v427
  %v429 = vpop.f32.mrb[0].mxu0
  %430 = vmatprep.mubr.f32.mxu0 0.0
  %431 = vmatmul.mubr.f32.gmra.mrb[0].mxu0 %v333
  %v432 = vpop.f32.mrb[0].mxu0
  %v433 = vadd.f32 %v315, %v432
  %v434 = vpop.f32.mrb[0].mxu0
  %435 = vmatprep.mubr.f32.mxu0 0.0
  %436 = vmatmul.mubr.f32.gmra.mrb[0].mxu0 %v336
  %v437 = vpop.f32.mrb[0].mxu0
  %v438 = vadd.f32 %v315, %v437
  %v439 = vpop.f32.mrb[0].mxu0
  %440 = vmatprep.mubr.f32.mxu0 0.0
  %441 = vmatmul.mubr.f32.gmra.mrb[0].mxu0 %v339
  %v442 = vpop.f32.mrb[0].mxu0
  %v443 = vadd.f32 %v315, %v442
  %v444 = vpop.f32.mrb[0].mxu0
  %445 = vdwg.mxu0
  %v446 = vtanh.pop %v408
  %v447 = vtanh.pop %v413
  %v448 = vtanh.pop %v418
  %v449 = vtanh.pop %v423
  %v450 = vtanh.pop %v428
  %v451 = vtanh.pop %v433
  %v452 = vtanh.pop %v438
  %v453 = vtanh.pop %v443
  %v454 = vld [vmem:[%s2 + $0x30] sm:$0xff]
  %v455 = vld [vmem:[%s2 + $0x38] sm:$0xff]
  %v456 = vld [vmem:[%s2 + $0x40] sm:$0xff]
  %v457 = vld [vmem:[%s2 + $0x48] sm:$0xff]
  %v458 = vld [vmem:[%s2 + $0x52] sm:$0x1]
  %v459 = vlaneseq
  %v460 = vshrl.u32 %v459, 7
  %v461 = vsub.s32 0, %v460
  %v462 = vrot.slane %v458, %v461
  %v464 = vsel %vm316, %v446, 0
  %v467 = vsel %vm316, %v447, 0
  %v470 = vsel %vm316, %v448, 0
  %v473 = vsel %vm316, %v449, 0
  %v476 = vsel %vm316, %v450, 0
  %v479 = vsel %vm316, %v451, 0
  %v482 = vsel %vm316, %v452, 0
  %v485 = vsel %vm316, %v453, 0
  %487 = vmatprep.subr.mxu0 0.0
  %488 = vmatpush1.msra.mxu0 %v454
  %489 = vmatprep.subr.mxu0 0.0
  %490 = vmatpush1.msra.mxu0 %v455
  %491 = vmatprep.subr.mxu0 0.0
  %492 = vmatpush1.msra.mxu0 %v456
  %493 = vmatprep.subr.mxu0 0.0
  %494 = vmatpush1.msra.mxu0 %v457
  %495 = vmatprep.subr.mxu0 0.0
  %496 = vmatpush1.msra.mxu0 0.0
  %497 = vmatprep.subr.mxu0 0.0
  %498 = vmatpush1.msra.mxu0 0.0
  %499 = vmatprep.subr.mxu0 0.0
  %500 = vmatpush1.msra.mxu0 0.0
  %501 = vmatprep.subr.mxu0 0.0
  %502 = vmatpush1.msra.mxu0 0.0
  %503 = vmatprep.subr.mxu0 0.0
  %504 = vmatpush1.msra.mxu0 0.0
  %505 = vmatprep.subr.mxu0 0.0
  %506 = vmatpush1.msra.mxu0 0.0
  %507 = vmatprep.subr.mxu0 0.0
  %508 = vmatpush1.msra.mxu0 0.0
  %509 = vmatprep.subr.mxu0 0.0
  %510 = vmatpush1.msra.mxu0 0.0
  %511 = vmatprep.subr.mxu0 0.0
  %512 = vmatpush1.msra.mxu0 0.0
  %513 = vmatprep.subr.mxu0 0.0
  %514 = vmatpush1.msra.mxu0 0.0
  %515 = vmatprep.subr.mxu0 0.0
  %516 = vmatpush1.msra.mxu0 0.0
  %517 = vmatprep.subr.mxu0 0.0
  %518 = vmatpush1.msra.mxu0 0.0
  %519 = vmatprep.subr.mxu0 0.0
  %520 = vmatpush1.msra.mxu0 0.0
  %521 = vmatprep.subr.mxu0 0.0
  %522 = vmatpush1.msra.mxu0 0.0
  %523 = vmatprep.subr.mxu0 0.0
  %524 = vmatpush1.msra.mxu0 0.0
  %525 = vmatprep.subr.mxu0 0.0
  %526 = vmatpush1.msra.mxu0 0.0
  %527 = vmatprep.subr.mxu0 0.0
  %528 = vmatpush1.msra.mxu0 0.0
  %529 = vmatprep.subr.mxu0 0.0
  %530 = vmatpush1.msra.mxu0 0.0
  %531 = vmatprep.subr.mxu0 0.0
  %532 = vmatpush1.msra.mxu0 0.0
  %533 = vmatprep.subr.mxu0 0.0
  %534 = vmatpush1.msra.mxu0 0.0
  %535 = vmatprep.subr.mxu0 0.0
  %536 = vmatpush1.msra.mxu0 0.0
  %537 = vmatprep.subr.mxu0 0.0
  %538 = vmatpush1.msra.mxu0 0.0
  %539 = vmatprep.subr.mxu0 0.0
  %540 = vmatpush1.msra.mxu0 0.0
  %541 = vmatprep.subr.mxu0 0.0
  %542 = vmatpush1.msra.mxu0 0.0
  %543 = vmatprep.subr.mxu0 0.0
  %544 = vmatpush1.msra.mxu0 0.0
  %545 = vmatprep.subr.mxu0 0.0
  %546 = vmatpush1.msra.mxu0 0.0
  %547 = vmatprep.subr.mxu0 0.0
  %548 = vmatpush1.msra.mxu0 0.0
  %549 = vmatprep.subr.mxu0 0.0
  %550 = vmatpush1.msra.mxu0 0.0
  %551 = vmatprep.mubr.f32.mxu0 0.0
  %552 = vmatmul.mubr.f32.gmra.mrb[0].mxu0 %v464
  %v553 = vpop.f32.mrb[0].mxu0
  %v554 = vadd.f32 %v462, %v553
  %v555 = vpop.f32.mrb[0].mxu0
  %556 = vmatprep.mubr.f32.mxu0 0.0
  %557 = vmatmul.mubr.f32.gmra.mrb[0].mxu0 %v467
  %v558 = vpop.f32.mrb[0].mxu0
  %v559 = vadd.f32 %v462, %v558
  %v560 = vpop.f32.mrb[0].mxu0
  %561 = vmatprep.mubr.f32.mxu0 0.0
  %562 = vmatmul.mubr.f32.gmra.mrb[0].mxu0 %v470
  %v563 = vpop.f32.mrb[0].mxu0
  %v564 = vadd.f32 %v462, %v563
  %v565 = vpop.f32.mrb[0].mxu0
  %566 = vmatprep.mubr.f32.mxu0 0.0
  %567 = vmatmul.mubr.f32.gmra.mrb[0].mxu0 %v473
  %v568 = vpop.f32.mrb[0].mxu0
  %v569 = vadd.f32 %v462, %v568
  %v570 = vpop.f32.mrb[0].mxu0
  %571 = vmatprep.mubr.f32.mxu0 0.0
  %572 = vmatmul.mubr.f32.gmra.mrb[0].mxu0 %v476
  %v573 = vpop.f32.mrb[0].mxu0
  %v574 = vadd.f32 %v462, %v573
  %v575 = vpop.f32.mrb[0].mxu0
  %576 = vmatprep.mubr.f32.mxu0 0.0
  %577 = vmatmul.mubr.f32.gmra.mrb[0].mxu0 %v479
  %v578 = vpop.f32.mrb[0].mxu0
  %v579 = vadd.f32 %v462, %v578
  %v580 = vpop.f32.mrb[0].mxu0
  %581 = vmatprep.mubr.f32.mxu0 0.0
  %582 = vmatmul.mubr.f32.gmra.mrb[0].mxu0 %v482
  %v583 = vpop.f32.mrb[0].mxu0
  %v584 = vadd.f32 %v462, %v583
  %v585 = vpop.f32.mrb[0].mxu0
  %586 = vmatprep.mubr.f32.mxu0 0.0
  %587 = vmatmul.mubr.f32.gmra.mrb[0].mxu0 %v485
  %v588 = vpop.f32.mrb[0].mxu0
  %v589 = vadd.f32 %v462, %v588
  %v590 = vpop.f32.mrb[0].mxu0
  %591 = vdwg.mxu0
  %592 = vst.msk [vmem:[%s3] sm:$0xff] %vm34, %v23
  %593 = vst.msk [vmem:[%s3 + $0x8] sm:$0xff] %vm34, %v24
  %594 = vst.msk [vmem:[%s3 + $0x10] sm:$0xff] %vm34, %v25
  %595 = vst.msk [vmem:[%s3 + $0x18] sm:$0xff] %vm34, %v26
  %596 = vst.msk [vmem:[%s3 + $0x20] sm:$0xff] %vm34, %v27
  %597 = vst.msk [vmem:[%s3 + $0x28] sm:$0xff] %vm34, %v28
  %598 = vst.msk [vmem:[%s3 + $0x30] sm:$0xff] %vm34, %v29
  %599 = vst.msk [vmem:[%s3 + $0x38] sm:$0xff] %vm34, %v30
  %600 = vst.msk [vmem:[%s3 + $0x40] sm:$0xff] %vm34, %v554
  %601 = vst.msk [vmem:[%s3 + $0x48] sm:$0xff] %vm34, %v559
  %602 = vst.msk [vmem:[%s3 + $0x50] sm:$0xff] %vm34, %v564
  %603 = vst.msk [vmem:[%s3 + $0x58] sm:$0xff] %vm34, %v569
  %604 = vst.msk [vmem:[%s3 + $0x60] sm:$0xff] %vm34, %v574
  %605 = vst.msk [vmem:[%s3 + $0x68] sm:$0xff] %vm34, %v579
  %606 = vst.msk [vmem:[%s3 + $0x70] sm:$0xff] %vm34, %v584
  %607 = vst.msk [vmem:[%s3 + $0x78] sm:$0xff] %vm34, %v589
  // Predicated region
  $region14: #{second_order_ode_func.1} parent=0 // pred_check
    _
  $region15: #{second_order_ode_func.1} parent=0 // pred_check_branch
    %609 = sbr.rel (0) target = $region17
  $region16: #{second_order_ode_func.1} parent=0 // pred_region
    _
  $region17: #{second_order_ode_func.1} parent=0 // pred_fallthru
    _
  // Predicated region
  $region18: #{second_order_ode_func.1} parent=0 // pred_check
    _
  $region19: #{second_order_ode_func.1} parent=0 // pred_check_branch
    %611 = sbr.rel (0) target = $region21
  $region20: #{second_order_ode_func.1} parent=0 // pred_region
    _
  $region21: #{second_order_ode_func.1} parent=0 // pred_fallthru
    _

</llo_original>
